<compile_context>
chip_gen: v7x
topology: tpu7x:2x2x1
jax: 0.10.0
libtpu: 0.0.40
codegen_flags: <defaults>
</compile_context>

<pallas_src>
import jax
import jax.numpy as jnp
from jax.experimental import pallas as pl
from jax.experimental.pallas import tpu as pltpu


def _round_up(n, m):
    return ((n + m - 1) // m) * m


def _sublane(dtype):
    # Min sublane multiple for dense packing: 8 (f32), 16 (bf16), 32 (int8/fp8).
    return max(8, 32 // jnp.dtype(dtype).itemsize)


def _pick_batch_tile(B, sublane, batch_tile):
    batch_tile = max(_round_up(batch_tile, sublane), sublane)
    if B >= 2 * sublane:
        # Prefer >= 2 batch tiles so the "parallel" axis can shard across the
        # two v7x TensorCores; split near the middle to keep padding waste low.
        tb = min(_round_up((B + 1) // 2, sublane), batch_tile)
    else:
        tb = _round_up(B, sublane)
    bp = _round_up(B, tb)
    return tb, bp


def _vmem_limit_bytes(xp, hp, tb, w_itemsize, a_itemsize):
    """Estimate the scoped-VMEM budget this kernel needs (with headroom)."""
    resident = (xp + hp) * 3 * hp * w_itemsize + (3 * hp + hp) * 4   # weights + biases
    tiles = tb * (xp + 2 * hp) * a_itemsize                          # x / h0 / out tiles
    gates = tb * (6 * hp + 4 * hp) * 4                               # f32 gx, gh, temps
    need = 2 * resident + 2 * tiles + gates + (2 << 20)
    # Stay below v7x's 64 MiB physical VMEM; >= 32 MiB is fine on every gen.
    return int(min(max(need, 32 << 20), 56 << 20))


def gru_seq_kernel(x_ref, h0_ref, wx_ref, wh_ref, bx_ref, bu_ref, out_ref, h_carry):
    """Grid = (batch_tiles, T); time axis is "arbitrary", h carried in VMEM.

    x_ref  : (tb, Xp)     input tile for timestep t (leading time dim squeezed)
    h0_ref : (tb, Hp)     initial hidden state tile (read only at t == 0)
    wx_ref : (Xp, 3*Hp)   packed [Wr_x | Wz_x | Wc]
    wh_ref : (Hp, 3*Hp)   packed [Wr_h | Wz_h | Wu]
    bx_ref : (1, 3*Hp)    packed [br | bz | bc]  (f32)
    bu_ref : (1, Hp)      bu                     (f32)
    out_ref: (tb, Hp)     new hidden state tile for timestep t
    h_carry: (tb, Hp)     f32 scratch, hidden state carried across timesteps
    """
    t = pl.program_id(1)
    hp = out_ref.shape[-1]

    @pl.when(t == 0)
    def _():
        h_carry[...] = h0_ref[...].astype(jnp.float32)

    h = h_carry[...]                       # f32 carry
    x = x_ref[...]                         # activation dtype; MXU accumulates in f32

    # Two lane-dense packed matmuls (N = 3*Hp), f32 accumulation on the MXU.
    gx = jnp.dot(x, wx_ref[...], preferred_element_type=jnp.float32) + bx_ref[...]
    gh = jnp.dot(h.astype(wh_ref.dtype), wh_ref[...],
                 preferred_element_type=jnp.float32)

    # r / z pre-activations as one combined slab add; lane-aligned static slices.
    rz = gx[:, 0:2 * hp] + gh[:, 0:2 * hp]
    r = jax.nn.sigmoid(rz[:, 0:hp])
    z = jax.nn.sigmoid(rz[:, hp:2 * hp])
    u = jnp.tanh(gx[:, 2 * hp:3 * hp] + r * (gh[:, 2 * hp:3 * hp] + bu_ref[...]))

    # z*h + (1-z)*u  ==  u + z*(h - u)   (one fewer VPU op per element)
    h_new = u + z * (h - u)
    h_carry[...] = h_new
    out_ref[...] = h_new.astype(out_ref.dtype)


def pack_gru_params(params, x_dim, h_dim, dtype=jnp.float32):
    """One-time glue (call once, outside the hot path / scan): transpose, split
    and pad the PyTorch-layout weights into the packed lane-dense layout."""
    hp = _round_up(h_dim, 128)
    xp = _round_up(x_dim, _sublane(dtype))

    wr_t = params["wr"].T.astype(dtype)   # (x_dim + h_dim, h_dim)
    wz_t = params["wz"].T.astype(dtype)
    wc_t = params["wc"].T.astype(dtype)   # (x_dim, h_dim)
    wu_t = params["wu"].T.astype(dtype)   # (h_dim, h_dim)

    wx = jnp.zeros((xp, 3 * hp), dtype)
    wx = wx.at[:x_dim, 0:h_dim].set(wr_t[:x_dim])
    wx = wx.at[:x_dim, hp:hp + h_dim].set(wz_t[:x_dim])
    wx = wx.at[:x_dim, 2 * hp:2 * hp + h_dim].set(wc_t)

    wh = jnp.zeros((hp, 3 * hp), dtype)
    wh = wh.at[:h_dim, 0:h_dim].set(wr_t[x_dim:])
    wh = wh.at[:h_dim, hp:hp + h_dim].set(wz_t[x_dim:])
    wh = wh.at[:h_dim, 2 * hp:2 * hp + h_dim].set(wu_t)

    bx = jnp.zeros((1, 3 * hp), jnp.float32)
    bx = bx.at[0, 0:h_dim].set(params["br"].astype(jnp.float32))
    bx = bx.at[0, hp:hp + h_dim].set(params["bz"].astype(jnp.float32))
    bx = bx.at[0, 2 * hp:2 * hp + h_dim].set(params["bc"].astype(jnp.float32))

    bu = jnp.zeros((1, hp), jnp.float32)
    bu = bu.at[0, 0:h_dim].set(params["bu"].astype(jnp.float32))

    return {"wx": wx, "wh": wh, "bx": bx, "bu": bu,
            "x_dim": x_dim, "h_dim": h_dim, "xp": xp, "hp": hp}


def gru_sequence(xs, h0, packed, *, batch_tile=256):
    """Run T GRU steps in one kernel.

    xs: (T, B, x_dim), h0: (B, h_dim), packed: output of pack_gru_params.
    Returns all hidden states, shape (T, B, h_dim).
    """
    T, B, x_dim = xs.shape
    _, h_dim = h0.shape
    assert x_dim == packed["x_dim"] and h_dim == packed["h_dim"]
    xp, hp = packed["xp"], packed["hp"]

    sub = _sublane(xs.dtype)
    tb, bp = _pick_batch_tile(B, sub, batch_tile)

    # Pad once for the whole sequence (not per timestep). Zero padding is
    # harmless: padded rows/cols are sliced off and padded weight rows are 0.
    xs_p = jnp.pad(xs, ((0, 0), (0, bp - B), (0, xp - x_dim)))
    h0_p = jnp.pad(h0, ((0, bp - B), (0, hp - h_dim)))

    vmem_limit = _vmem_limit_bytes(
        xp, hp, tb,
        jnp.dtype(packed["wx"].dtype).itemsize,
        jnp.dtype(xs.dtype).itemsize)

    out_p = pl.pallas_call(
        gru_seq_kernel,
        out_shape=jax.ShapeDtypeStruct((T, bp, hp), h0.dtype),
        grid=(bp // tb, T),                                  # batch outer, time inner
        in_specs=[
            pl.BlockSpec((None, tb, xp), lambda b, t: (t, b, 0)),   # x per timestep
            pl.BlockSpec((tb, hp), lambda b, t: (b, 0)),            # h0 per batch tile
            pl.BlockSpec((xp, 3 * hp), lambda b, t: (0, 0)),        # packed x-weights (resident)
            pl.BlockSpec((hp, 3 * hp), lambda b, t: (0, 0)),        # packed h-weights (resident)
            pl.BlockSpec((1, 3 * hp), lambda b, t: (0, 0)),         # packed biases br|bz|bc
            pl.BlockSpec((1, hp), lambda b, t: (0, 0)),             # bu
        ],
        out_specs=pl.BlockSpec((None, tb, hp), lambda b, t: (t, b, 0)),
        scratch_shapes=[pltpu.VMEM((tb, hp), jnp.float32)],         # h carry
        compiler_params=pltpu.CompilerParams(
            dimension_semantics=("parallel", "arbitrary"),          # megacore on batch
            vmem_limit_bytes=vmem_limit,
        ),
    )(xs_p, h0_p, packed["wx"], packed["wh"], packed["bx"], packed["bu"])

    return out_p[:, :B, :h_dim]


def gru_cell(x, h, packed, *, batch_tile=256):
    """Single GRUCell forward step (the original module): x (B, x_dim), h (B, h_dim)."""
    return gru_sequence(x[None], h, packed, batch_tile=batch_tile)[0]


def gru_cell_ref(x, h, params):
    """Pure-JAX reference mirroring the PyTorch module exactly."""
    xh = jnp.concatenate([x, h], axis=-1)
    r = jax.nn.sigmoid(xh @ params["wr"].T + params["br"])
    z = jax.nn.sigmoid(xh @ params["wz"].T + params["bz"])
    u = jnp.tanh(x @ params["wc"].T + params["bc"]
                 + r * (h @ params["wu"].T + params["bu"]))
    return z * h + (1.0 - z) * u


def gru_sequence_ref(xs, h0, params):
    def step(h, x):
        h_new = gru_cell_ref(x, h, params)
        return h_new, h_new
    _, hs = jax.lax.scan(step, h0, xs)
    return hs


if __name__ == "__main__":
    B, x_dim, h_dim, T = 8, 16, 32, 6

    key = jax.random.PRNGKey(0)
    ks = jax.random.split(key, 11)

    # Deterministic parameter init (PyTorch shape conventions: (out, in) weights).
    def uinit(k, shape, fan_in):
        bound = 1.0 / jnp.sqrt(fan_in)
        return jax.random.uniform(k, shape, jnp.float32, -bound, bound)

    params = {
        "wr": uinit(ks[0], (h_dim, x_dim + h_dim), x_dim + h_dim),
        "br": uinit(ks[1], (h_dim,), x_dim + h_dim),
        "wz": uinit(ks[2], (h_dim, x_dim + h_dim), x_dim + h_dim),
        "bz": uinit(ks[3], (h_dim,), x_dim + h_dim),
        "wc": uinit(ks[4], (h_dim, x_dim), x_dim),
        "bc": uinit(ks[5], (h_dim,), x_dim),
        "wu": uinit(ks[6], (h_dim, h_dim), h_dim),
        "bu": uinit(ks[7], (h_dim,), h_dim),
    }

    x = jax.random.normal(ks[8], (B, x_dim), jnp.float32)
    h = jax.random.normal(ks[9], (B, h_dim), jnp.float32)
    xs = jax.random.normal(ks[10], (T, B, x_dim), jnp.float32)

    # ---- f32 path: single step (the original module's forward) ----
    packed_f32 = pack_gru_params(params, x_dim, h_dim, jnp.float32)
    out = jax.block_until_ready(gru_cell(x, h, packed_f32))
    ref = gru_cell_ref(x, h, params)
    assert out.shape == (B, h_dim)
    assert jnp.allclose(out, ref, atol=1e-5, rtol=1e-5), "single-step mismatch"

    # ---- f32 path: T steps in one kernel (in-kernel time loop) ----
    hs = jax.block_until_ready(gru_sequence(xs, h, packed_f32))
    hs_ref = gru_sequence_ref(xs, h, params)
    assert hs.shape == (T, B, h_dim)
    assert jnp.allclose(hs, hs_ref, atol=1e-4, rtol=1e-4), "sequence mismatch"

    # ---- bf16 weights/activations (f32 MXU accumulation, f32 h carry) ----
    packed_bf16 = pack_gru_params(params, x_dim, h_dim, jnp.bfloat16)
    hs_bf16 = jax.block_until_ready(
        gru_sequence(xs.astype(jnp.bfloat16), h.astype(jnp.bfloat16), packed_bf16))
    assert hs_bf16.shape == (T, B, h_dim)
    assert jnp.allclose(hs_bf16.astype(jnp.float32), hs_ref, atol=1e-1, rtol=1e-1), \
        "bf16 sequence mismatch"

    print("KERNEL_OK")
</pallas_src>

<mosaic_0001>
module attributes {stable_mosaic.version = 11 : i64} {
  func.func @gru_seq_kernel(%arg0: i32, %arg1: i32, %arg2: memref<1x8x16xf32, #tpu.memory_space<vmem>>, %arg3: memref<8x128xf32, #tpu.memory_space<vmem>>, %arg4: memref<16x384xf32, #tpu.memory_space<vmem>>, %arg5: memref<128x384xf32, #tpu.memory_space<vmem>>, %arg6: memref<1x384xf32, #tpu.memory_space<vmem>>, %arg7: memref<1x128xf32, #tpu.memory_space<vmem>>, %arg8: memref<1x8x128xf32, #tpu.memory_space<vmem>>, %arg9: memref<8x128xf32, #tpu.memory_space<vmem>>) attributes {dimension_semantics = [#tpu.dimension_semantics<parallel>, #tpu.dimension_semantics<arbitrary>], iteration_bounds = array<i64: 1, 1>, scalar_prefetch = 0 : i64, scratch_operands = 1 : i64, tpu.core_type = #tpu.core_type<tc>, window_params = [{transform_indices = @transform_0, window_bounds = array<i64: 1, 8, 16>}, {transform_indices = @transform_1, window_bounds = array<i64: 8, 128>}, {pipeline_mode = #tpu.pipeline_mode<synchronous>, transform_indices = @transform_2, window_bounds = array<i64: 16, 384>}, {pipeline_mode = #tpu.pipeline_mode<synchronous>, transform_indices = @transform_3, window_bounds = array<i64: 128, 384>}, {pipeline_mode = #tpu.pipeline_mode<synchronous>, transform_indices = @transform_4, window_bounds = array<i64: 1, 384>}, {pipeline_mode = #tpu.pipeline_mode<synchronous>, transform_indices = @transform_5, window_bounds = array<i64: 1, 128>}, {transform_indices = @transform_6, window_bounds = array<i64: 1, 8, 128>}]} {
    %c0_i32 = arith.constant 0 : i32
    %0 = arith.cmpi eq, %arg1, %c0_i32 : i32
    %1 = arith.extui %0 : i1 to i32
    %c0_i32_0 = arith.constant 0 : i32
    %2 = arith.cmpi ne, %1, %c0_i32_0 : i32
    scf.if %2 {
      %c0_21 = arith.constant 0 : index
      %c0_22 = arith.constant 0 : index
      %43 = vector.load %arg3[%c0_21, %c0_22] : memref<8x128xf32, #tpu.memory_space<vmem>>, vector<8x128xf32>
      %c0_23 = arith.constant 0 : index
      %c0_24 = arith.constant 0 : index
      %44 = vector.load %arg9[%c0_23, %c0_24] : memref<8x128xf32, #tpu.memory_space<vmem>>, vector<8x128xf32>
      tpu.vector_store %arg9[%c0_23, %c0_24], %43 {strides = array<i32>} : memref<8x128xf32, #tpu.memory_space<vmem>>, vector<8x128xf32>,
    } else {
    }
    %c0 = arith.constant 0 : index
    %c0_1 = arith.constant 0 : index
    %3 = vector.load %arg9[%c0, %c0_1] : memref<8x128xf32, #tpu.memory_space<vmem>>, vector<8x128xf32>
    %c0_2 = arith.constant 0 : index
    %c0_3 = arith.constant 0 : index
    %c0_4 = arith.constant 0 : index
    %4 = vector.load %arg2[%c0_2, %c0_3, %c0_4] : memref<1x8x16xf32, #tpu.memory_space<vmem>>, vector<1x8x16xf32>
    %5 = vector.shape_cast %4 : vector<1x8x16xf32> to vector<8x16xf32>
    %c0_5 = arith.constant 0 : index
    %c0_6 = arith.constant 0 : index
    %6 = vector.load %arg4[%c0_5, %c0_6] : memref<16x384xf32, #tpu.memory_space<vmem>>, vector<16x384xf32>
    %cst = arith.constant dense<0.000000e+00> : vector<8x384xf32>
    %7 = tpu.matmul %5, %6, %cst {dimension_numbers = #tpu.dot_dimension_numbers<[1], [0], [0], [1], [0, 0, 1, 1], [], []>} : vector<8x16xf32>, vector<16x384xf32>, vector<8x384xf32> -> vector<8x384xf32>
    %c0_7 = arith.constant 0 : index
    %c0_8 = arith.constant 0 : index
    %8 = vector.load %arg6[%c0_7, %c0_8] : memref<1x384xf32, #tpu.memory_space<vmem>>, vector<1x384xf32>
    %9 = vector.broadcast %8 : vector<1x384xf32> to vector<8x384xf32>
    %10 = arith.addf %7, %9 : vector<8x384xf32>
    %c0_9 = arith.constant 0 : index
    %c0_10 = arith.constant 0 : index
    %11 = vector.load %arg5[%c0_9, %c0_10] : memref<128x384xf32, #tpu.memory_space<vmem>>, vector<128x384xf32>
    %cst_11 = arith.constant dense<0.000000e+00> : vector<8x384xf32>
    %12 = tpu.matmul %3, %11, %cst_11 {dimension_numbers = #tpu.dot_dimension_numbers<[1], [0], [0], [1], [0, 0, 1, 1], [], []>} : vector<8x128xf32>, vector<128x384xf32>, vector<8x384xf32> -> vector<8x384xf32>
    %13 = vector.extract_strided_slice %10 {offsets = [0, 0], sizes = [8, 256], strides = [1, 1]} : vector<8x384xf32> to vector<8x256xf32>
    %14 = vector.extract_strided_slice %12 {offsets = [0, 0], sizes = [8, 256], strides = [1, 1]} : vector<8x384xf32> to vector<8x256xf32>
    %15 = arith.addf %13, %14 : vector<8x256xf32>
    %16 = vector.extract_strided_slice %15 {offsets = [0, 0], sizes = [8, 128], strides = [1, 1]} : vector<8x256xf32> to vector<8x128xf32>
    %17 = arith.negf %16 : vector<8x128xf32>
    %18 = math.exp %17 : vector<8x128xf32>
    %cst_12 = arith.constant 1.000000e+00 : f32
    %19 = vector.broadcast %cst_12 : f32 to vector<8x128xf32>
    %20 = arith.addf %19, %18 : vector<8x128xf32>
    %21 = arith.divf %19, %20 : vector<8x128xf32>
    %22 = vector.extract_strided_slice %15 {offsets = [0, 128], sizes = [8, 128], strides = [1, 1]} : vector<8x256xf32> to vector<8x128xf32>
    %23 = arith.negf %22 : vector<8x128xf32>
    %24 = math.exp %23 : vector<8x128xf32>
    %cst_13 = arith.constant 1.000000e+00 : f32
    %25 = vector.broadcast %cst_13 : f32 to vector<8x128xf32>
    %26 = arith.addf %25, %24 : vector<8x128xf32>
    %27 = arith.divf %25, %26 : vector<8x128xf32>
    %28 = vector.extract_strided_slice %10 {offsets = [0, 256], sizes = [8, 128], strides = [1, 1]} : vector<8x384xf32> to vector<8x128xf32>
    %29 = vector.extract_strided_slice %12 {offsets = [0, 256], sizes = [8, 128], strides = [1, 1]} : vector<8x384xf32> to vector<8x128xf32>
    %c0_14 = arith.constant 0 : index
    %c0_15 = arith.constant 0 : index
    %30 = vector.load %arg7[%c0_14, %c0_15] : memref<1x128xf32, #tpu.memory_space<vmem>>, vector<1x128xf32>
    %31 = vector.broadcast %30 : vector<1x128xf32> to vector<8x128xf32>
    %32 = arith.addf %29, %31 : vector<8x128xf32>
    %33 = arith.mulf %21, %32 : vector<8x128xf32>
    %34 = arith.addf %28, %33 : vector<8x128xf32>
    %35 = math.tanh %34 : vector<8x128xf32>
    %36 = arith.subf %3, %35 : vector<8x128xf32>
    %37 = arith.mulf %27, %36 : vector<8x128xf32>
    %38 = arith.addf %35, %37 : vector<8x128xf32>
    %c0_16 = arith.constant 0 : index
    %c0_17 = arith.constant 0 : index
    %39 = vector.load %arg9[%c0_16, %c0_17] : memref<8x128xf32, #tpu.memory_space<vmem>>, vector<8x128xf32>
    tpu.vector_store %arg9[%c0_16, %c0_17], %38 {strides = array<i32>} : memref<8x128xf32, #tpu.memory_space<vmem>>, vector<8x128xf32>,
    %c0_18 = arith.constant 0 : index
    %c0_19 = arith.constant 0 : index
    %c0_20 = arith.constant 0 : index
    %40 = vector.load %arg8[%c0_18, %c0_19, %c0_20] : memref<1x8x128xf32, #tpu.memory_space<vmem>>, vector<1x8x128xf32>
    %41 = vector.shape_cast %40 : vector<1x8x128xf32> to vector<8x128xf32>
    %42 = vector.shape_cast %38 : vector<8x128xf32> to vector<1x8x128xf32>
    tpu.vector_store %arg8[%c0_18, %c0_19, %c0_20], %42 {strides = array<i32>} : memref<1x8x128xf32, #tpu.memory_space<vmem>>, vector<1x8x128xf32>,
    return
  }
  func.func @transform_0(%arg0: i32, %arg1: i32) -> (i32, i32, i32) {
    %c0_i32 = arith.constant 0 : i32
    %c0_i32_0 = arith.constant 0 : i32
    return %arg1, %arg0, %c0_i32 : i32, i32, i32
  }
  func.func @transform_1(%arg0: i32, %arg1: i32) -> (i32, i32) {
    %c0_i32 = arith.constant 0 : i32
    %c0_i32_0 = arith.constant 0 : i32
    return %arg0, %c0_i32 : i32, i32
  }
  func.func @transform_2(%arg0: i32, %arg1: i32) -> (i32, i32) {
    %c0_i32 = arith.constant 0 : i32
    %c0_i32_0 = arith.constant 0 : i32
    %c0_i32_1 = arith.constant 0 : i32
    return %c0_i32, %c0_i32_0 : i32, i32
  }
  func.func @transform_3(%arg0: i32, %arg1: i32) -> (i32, i32) {
    %c0_i32 = arith.constant 0 : i32
    %c0_i32_0 = arith.constant 0 : i32
    %c0_i32_1 = arith.constant 0 : i32
    return %c0_i32, %c0_i32_0 : i32, i32
  }
  func.func @transform_4(%arg0: i32, %arg1: i32) -> (i32, i32) {
    %c0_i32 = arith.constant 0 : i32
    %c0_i32_0 = arith.constant 0 : i32
    %c0_i32_1 = arith.constant 0 : i32
    return %c0_i32, %c0_i32_0 : i32, i32
  }
  func.func @transform_5(%arg0: i32, %arg1: i32) -> (i32, i32) {
    %c0_i32 = arith.constant 0 : i32
    %c0_i32_0 = arith.constant 0 : i32
    %c0_i32_1 = arith.constant 0 : i32
    return %c0_i32, %c0_i32_0 : i32, i32
  }
  func.func @transform_6(%arg0: i32, %arg1: i32) -> (i32, i32, i32) {
    %c0_i32 = arith.constant 0 : i32
    %c0_i32_0 = arith.constant 0 : i32
    return %arg1, %arg0, %c0_i32 : i32, i32, i32
  }
}

</mosaic_0001>

<llo_original>
// kernel: tpu_custom_call.1
$region0: #{tpu_custom_call.1}
  #allocation0 [shape = 'u32[]', space=smem, size = 0x4, offset = 0x4, fixed_abs, tag = 'smem constant byte address 0x4 - core index']
  #allocation1 [shape = 'u32[144,128]{1,0:T(1,128)}', space=vmem, size = 0x12000, scoped, tag = 'internal scratch']
  #allocation2 [shape = 'f32[8,128]{1,0:T(8,128)}', space=vmem, size = 0x1000, scoped, tag = 'scratch operand']
  %s0 = inlined_call_operand.hbm [shape: f32[1,8,16], index: 0, kind: input, shape index: {}]
  %s1 = inlined_call_operand.hbm [shape: f32[8,128], index: 1, kind: input, shape index: {}]
  %s2 = inlined_call_operand.hbm [shape: f32[16,384], index: 2, kind: input, shape index: {}]
  %s3 = inlined_call_operand.hbm [shape: f32[128,384], index: 3, kind: input, shape index: {}]
  %s4 = inlined_call_operand.vmem [shape: f32[1,384], index: 4, kind: input, shape index: {}]
  %s5 = inlined_call_operand.vmem [shape: f32[1,128], index: 5, kind: input, shape index: {}]
  %s6 = inlined_call_operand.hbm [shape: f32[1,8,128], index: 6, kind: output, shape index: {}]
  %s7 = sld [smem:[#allocation0]]
  $region54: #{tpu_custom_call.1} parent=0
    _
  %s9 = ssub.s32 1, %s7
  %s10 = scalar_select 0, %s9, %s7
  $region1: #{tpu_custom_call.1} parent=0
    #allocation3 [shape = 'u8[4096]{0}', space=vmem, size = 0x1000, scoped, tag = 'input window, operand 0, single buffered']
    #allocation4 [shape = 's32[1]{0}', space=sflag, size = 0x4, scoped, tag = 'scoped memory for tpu_custom_call.1']
    #allocation5 [shape = 's32[1]{0}', space=sflag, size = 0x4, scoped, tag = 'scoped memory for tpu_custom_call.1']
    #allocation6 [shape = 'u8[4096]{0}', space=vmem, size = 0x1000, scoped, tag = 'input window, operand 1, single buffered']
    #allocation7 [shape = 's32[1]{0}', space=sflag, size = 0x4, scoped, tag = 'scoped memory for tpu_custom_call.1']
    #allocation8 [shape = 'u8[24576]{0}', space=vmem, size = 0x6000, scoped, tag = 'input window, operand 2, single buffered']
    #allocation9 [shape = 'u8[196608]{0}', space=vmem, size = 0x30000, scoped, tag = 'input window, operand 3, single buffered']
    #allocation10 [shape = 's32[1]{0}', space=sflag, size = 0x4, scoped, tag = 'scoped memory for tpu_custom_call.1']
    #allocation11 [shape = 'u8[4096]{0}', space=vmem, size = 0x1000, scoped, tag = 'output window, operand 0, single buffered']
    %11 = vsyncpa [#allocation4], 0
    %12 = vsyncpa [#allocation7], 0
    %13 = vsyncpa [#allocation10], 0
    %14 = vsyncpa [#allocation5], 0
    // Predicated region
    $region2: #{tpu_custom_call.1} parent=1 // pred_check
      _
    $region3: #{tpu_custom_call.1} parent=1 // pred_check_branch
      %16 = sbr.rel (0) target = $region5
    $region4: #{tpu_custom_call.1} parent=1 // pred_region
      %s18 = ssub.s32 128, 128
      %19 = vsyncadd [#allocation4], %s18
      %s21 = sshll.u32 [#allocation3], 4
      %s22 = int_to_ptr.vmem [resolvable:$true] %s21
      %24 = dma.hbm_to_vmem [thread:$0]  %s0, 128, %s22, [#allocation4]
    $region5: #{tpu_custom_call.1} parent=1 // pred_fallthru
      _
    // Predicated region
    $region6: #{tpu_custom_call.1} parent=1 // pred_check
      _
    $region7: #{tpu_custom_call.1} parent=1 // pred_check_branch
      %26 = sbr.rel (0) target = $region9
    $region8: #{tpu_custom_call.1} parent=1 // pred_region
      %s28 = ssub.s32 128, 128
      %29 = vsyncadd [#allocation7], %s28
      %s31 = sshll.u32 [#allocation6], 4
      %s32 = int_to_ptr.vmem [resolvable:$true] %s31
      %34 = dma.hbm_to_vmem [thread:$0]  %s1, 128, %s32, [#allocation7]
    $region9: #{tpu_custom_call.1} parent=1 // pred_fallthru
      _
    // Predicated region
    $region10: #{tpu_custom_call.1} parent=1 // pred_check
      _
    $region11: #{tpu_custom_call.1} parent=1 // pred_check_branch
      %36 = sbr.rel (0) target = $region13
    $region12: #{tpu_custom_call.1} parent=1 // pred_region
      %s38 = ssub.s32 768, 768
      %39 = vsyncadd [#allocation7], %s38
      %s40 = sshll.u32 [#allocation8], 4
      %s41 = int_to_ptr.vmem [resolvable:$true] %s40
      %46 = dma.hbm_to_vmem [thread:$0]  %s2, 768, %s41, [#allocation7], 384, 384, 24
    $region13: #{tpu_custom_call.1} parent=1 // pred_fallthru
      _
    // Predicated region
    $region14: #{tpu_custom_call.1} parent=1 // pred_check
      _
    $region15: #{tpu_custom_call.1} parent=1 // pred_check_branch
      %48 = sbr.rel (0) target = $region17
    $region16: #{tpu_custom_call.1} parent=1 // pred_region
      %s50 = ssub.s32 6144, 6144
      %51 = vsyncadd [#allocation10], %s50
      %s52 = sshll.u32 [#allocation9], 4
      %s53 = int_to_ptr.vmem [resolvable:$true] %s52
      %58 = dma.hbm_to_vmem [thread:$0]  %s3, 6144, %s53, [#allocation10], 384, 384, 24
    $region17: #{tpu_custom_call.1} parent=1 // pred_fallthru
      _
    // Predicated region
    $region18: #{tpu_custom_call.1} parent=1 // pred_check
      _
    $region19: #{tpu_custom_call.1} parent=1 // pred_check_branch
      %60 = sbr.rel (0) target = $region21
    $region20: #{tpu_custom_call.1} parent=1 // pred_region
      _
    $region21: #{tpu_custom_call.1} parent=1 // pred_fallthru
      _
    // Predicated region
    $region22: #{tpu_custom_call.1} parent=1 // pred_check
      _
    $region23: #{tpu_custom_call.1} parent=1 // pred_check_branch
      %62 = sbr.rel (0) target = $region25
    $region24: #{tpu_custom_call.1} parent=1 // pred_region
      _
    $region25: #{tpu_custom_call.1} parent=1 // pred_fallthru
      _
    // Predicated region
    $region26: #{tpu_custom_call.1} parent=1 // pred_check
      _
    $region27: #{tpu_custom_call.1} parent=1 // pred_check_branch
      %64 = sbr.rel (0) target = $region29
    $region28: #{tpu_custom_call.1} parent=1 // pred_region
      %65 = dma.done [#allocation4], 128
    $region29: #{tpu_custom_call.1} parent=1 // pred_fallthru
      _
    // Predicated region
    $region30: #{tpu_custom_call.1} parent=1 // pred_check
      _
    $region31: #{tpu_custom_call.1} parent=1 // pred_check_branch
      %67 = sbr.rel (0) target = $region33
    $region32: #{tpu_custom_call.1} parent=1 // pred_region
      %68 = dma.done [#allocation7], 128
    $region33: #{tpu_custom_call.1} parent=1 // pred_fallthru
      _
    // Predicated region
    $region34: #{tpu_custom_call.1} parent=1 // pred_check
      _
    $region35: #{tpu_custom_call.1} parent=1 // pred_check_branch
      %70 = sbr.rel (0) target = $region37
    $region36: #{tpu_custom_call.1} parent=1 // pred_region
      %71 = dma.done [#allocation7], 768
    $region37: #{tpu_custom_call.1} parent=1 // pred_fallthru
      _
    // Predicated region
    $region38: #{tpu_custom_call.1} parent=1 // pred_check
      _
    $region39: #{tpu_custom_call.1} parent=1 // pred_check_branch
      %73 = sbr.rel (0) target = $region41
    $region40: #{tpu_custom_call.1} parent=1 // pred_region
      %74 = dma.done [#allocation10], 6144
    $region41: #{tpu_custom_call.1} parent=1 // pred_fallthru
      _
    %p75 = scmp.eq.s32.totalorder 0, 0
    // Predicated region
    $region42: #{tpu_custom_call.1} parent=1 // pred_check
      %p76 = pneg %p75
    $region43: #{tpu_custom_call.1} parent=1 // pred_check_branch
      %78 = sbr.rel (%p76) target = $region45
    $region44: #{tpu_custom_call.1} parent=1 // pred_region
      %v79 = vld [vmem:[#allocation6] sm:$0xff]
      %80 = vst [vmem:[#allocation2] sm:$0xff] %v79
    $region45: #{tpu_custom_call.1} parent=1 // pred_fallthru
      _
    %v81 = vld [vmem:[#allocation2] sm:$0xff]
    %v82 = vld [vmem:[#allocation3] sm:$0xff]
    %v83 = vld [vmem:[#allocation8] sm:$0xff]
    %v84 = vld [vmem:[#allocation8 + $0x8] sm:$0xff]
    %v85 = vld [vmem:[#allocation8 + $0x10] sm:$0xff]
    %v86 = vld [vmem:[#allocation8 + $0x18] sm:$0xff]
    %v87 = vld [vmem:[#allocation8 + $0x20] sm:$0xff]
    %v88 = vld [vmem:[#allocation8 + $0x28] sm:$0xff]
    %v89 = vld [vmem:[%s4] sm:$0x7]
    %v91 = vlaneseq
    %v92 = vshrl.u32 %v91, 7
    %v93 = vsub.s32 0, %v92
    %v94 = vrot.slane %v89, %v93
    %v95 = vlaneseq
    %v96 = vshrl.u32 %v95, 7
    %v97 = vsub.s32 1, %v96
    %v98 = vrot.slane %v89, %v97
    %v99 = vlaneseq
    %v100 = vshrl.u32 %v99, 7
    %v101 = vsub.s32 2, %v100
    %v102 = vrot.slane %v89, %v101
    %vm106 = vcmask 130048
    %v108 = vsel %vm106, %v82, 0
    %110 = vmatprep.subr.mxu0 %v84
    %111 = vmatpush1.msra.mxu0 %v83
    %112 = vmatprep.subr.mxu0 %v87
    %113 = vmatpush1.msra.mxu0 %v86
    %114 = vmatprep.subr.mxu0 0.0
    %115 = vmatpush1.msra.mxu0 0.0
    %116 = vmatprep.subr.mxu0 0.0
    %117 = vmatpush1.msra.mxu0 0.0
    %118 = vmatprep.subr.mxu0 0.0
    %119 = vmatpush1.msra.mxu0 0.0
    %120 = vmatprep.subr.mxu0 0.0
    %121 = vmatpush1.msra.mxu0 0.0
    %122 = vmatprep.subr.mxu0 0.0
    %123 = vmatpush1.msra.mxu0 0.0
    %124 = vmatprep.subr.mxu0 0.0
    %125 = vmatpush1.msra.mxu0 0.0
    %126 = vmatprep.subr.mxu0 0.0
    %127 = vmatpush1.msra.mxu0 0.0
    %128 = vmatprep.subr.mxu0 0.0
    %129 = vmatpush1.msra.mxu0 0.0
    %130 = vmatprep.subr.mxu0 0.0
    %131 = vmatpush1.msra.mxu0 0.0
    %132 = vmatprep.subr.mxu0 0.0
    %133 = vmatpush1.msra.mxu0 0.0
    %134 = vmatprep.subr.mxu0 0.0
    %135 = vmatpush1.msra.mxu0 0.0
    %136 = vmatprep.subr.mxu0 0.0
    %137 = vmatpush1.msra.mxu0 0.0
    %138 = vmatprep.subr.mxu0 0.0
    %139 = vmatpush1.msra.mxu0 0.0
    %140 = vmatprep.subr.mxu0 0.0
    %141 = vmatpush1.msra.mxu0 0.0
    %142 = vmatprep.subr.mxu0 0.0
    %143 = vmatpush1.msra.mxu0 0.0
    %144 = vmatprep.subr.mxu0 0.0
    %145 = vmatpush1.msra.mxu0 0.0
    %146 = vmatprep.subr.mxu0 0.0
    %147 = vmatpush1.msra.mxu0 0.0
    %148 = vmatprep.subr.mxu0 0.0
    %149 = vmatpush1.msra.mxu0 0.0
    %150 = vmatprep.subr.mxu0 0.0
    %151 = vmatpush1.msra.mxu0 0.0
    %152 = vmatprep.subr.mxu0 0.0
    %153 = vmatpush1.msra.mxu0 0.0
    %154 = vmatprep.subr.mxu0 0.0
    %155 = vmatpush1.msra.mxu0 0.0
    %156 = vmatprep.subr.mxu0 0.0
    %157 = vmatpush1.msra.mxu0 0.0
    %158 = vmatprep.subr.mxu0 0.0
    %159 = vmatpush1.msra.mxu0 0.0
    %160 = vmatprep.subr.mxu0 0.0
    %161 = vmatpush1.msra.mxu0 0.0
    %162 = vmatprep.subr.mxu0 0.0
    %163 = vmatpush1.msra.mxu0 0.0
    %164 = vmatprep.subr.mxu0 0.0
    %165 = vmatpush1.msra.mxu0 0.0
    %166 = vmatprep.subr.mxu0 0.0
    %167 = vmatpush1.msra.mxu0 0.0
    %168 = vmatprep.subr.mxu0 0.0
    %169 = vmatpush1.msra.mxu0 0.0
    %170 = vmatprep.subr.mxu0 0.0
    %171 = vmatpush1.msra.mxu0 0.0
    %172 = vmatprep.subr.mxu0 0.0
    %173 = vmatpush1.msra.mxu0 0.0
    %174 = vmatprep.mubr.f32.mxu0 0.0
    %175 = vmatmul.mubr.f32.gmra.mrb[0].mxu0 %v108
    %v176 = vpop.f32.mrb[0].mxu0
    %v177 = vadd.f32 %v94, %v176
    %v178 = vpop.f32.mrb[0].mxu0
    %v179 = vadd.f32 %v98, %v178
    %180 = vdwg.mxu0
    %181 = vmatprep.subr.mxu0 0.0
    %182 = vmatpush1.msra.mxu0 %v85
    %183 = vmatprep.subr.mxu0 0.0
    %184 = vmatpush1.msra.mxu0 %v88
    %185 = vmatprep.subr.mxu0 0.0
    %186 = vmatpush1.msra.mxu0 0.0
    %187 = vmatprep.subr.mxu0 0.0
    %188 = vmatpush1.msra.mxu0 0.0
    %189 = vmatprep.subr.mxu0 0.0
    %190 = vmatpush1.msra.mxu0 0.0
    %191 = vmatprep.subr.mxu0 0.0
    %192 = vmatpush1.msra.mxu0 0.0
    %193 = vmatprep.subr.mxu0 0.0
    %194 = vmatpush1.msra.mxu0 0.0
    %195 = vmatprep.subr.mxu0 0.0
    %196 = vmatpush1.msra.mxu0 0.0
    %197 = vmatprep.subr.mxu0 0.0
    %198 = vmatpush1.msra.mxu0 0.0
    %199 = vmatprep.subr.mxu0 0.0
    %200 = vmatpush1.msra.mxu0 0.0
    %201 = vmatprep.subr.mxu0 0.0
    %202 = vmatpush1.msra.mxu0 0.0
    %203 = vmatprep.subr.mxu0 0.0
    %204 = vmatpush1.msra.mxu0 0.0
    %205 = vmatprep.subr.mxu0 0.0
    %206 = vmatpush1.msra.mxu0 0.0
    %207 = vmatprep.subr.mxu0 0.0
    %208 = vmatpush1.msra.mxu0 0.0
    %209 = vmatprep.subr.mxu0 0.0
    %210 = vmatpush1.msra.mxu0 0.0
    %211 = vmatprep.subr.mxu0 0.0
    %212 = vmatpush1.msra.mxu0 0.0
    %213 = vmatprep.subr.mxu0 0.0
    %214 = vmatpush1.msra.mxu0 0.0
    %215 = vmatprep.subr.mxu0 0.0
    %216 = vmatpush1.msra.mxu0 0.0
    %217 = vmatprep.subr.mxu0 0.0
    %218 = vmatpush1.msra.mxu0 0.0
    %219 = vmatprep.subr.mxu0 0.0
    %220 = vmatpush1.msra.mxu0 0.0
    %221 = vmatprep.subr.mxu0 0.0
    %222 = vmatpush1.msra.mxu0 0.0
    %223 = vmatprep.subr.mxu0 0.0
    %224 = vmatpush1.msra.mxu0 0.0
    %225 = vmatprep.subr.mxu0 0.0
    %226 = vmatpush1.msra.mxu0 0.0
    %227 = vmatprep.subr.mxu0 0.0
    %228 = vmatpush1.msra.mxu0 0.0
    %229 = vmatprep.subr.mxu0 0.0
    %230 = vmatpush1.msra.mxu0 0.0
    %231 = vmatprep.subr.mxu0 0.0
    %232 = vmatpush1.msra.mxu0 0.0
    %233 = vmatprep.subr.mxu0 0.0
    %234 = vmatpush1.msra.mxu0 0.0
    %235 = vmatprep.subr.mxu0 0.0
    %236 = vmatpush1.msra.mxu0 0.0
    %237 = vmatprep.subr.mxu0 0.0
    %238 = vmatpush1.msra.mxu0 0.0
    %239 = vmatprep.subr.mxu0 0.0
    %240 = vmatpush1.msra.mxu0 0.0
    %241 = vmatprep.subr.mxu0 0.0
    %242 = vmatpush1.msra.mxu0 0.0
    %243 = vmatprep.subr.mxu0 0.0
    %244 = vmatpush1.msra.mxu0 0.0
    %245 = vmatprep.mubr.f32.mxu0 0.0
    %246 = vmatmul.mubr.f32.gmra.mrb[0].mxu0 %v108
    %v247 = vpop.f32.mrb[0].mxu0
    %v248 = vadd.f32 %v102, %v247
    %v249 = vpop.f32.mrb[0].mxu0
    %250 = vdwg.mxu0
    %v251 = vld [vmem:[#allocation9] sm:$0xff]
    %v252 = vld [vmem:[#allocation9 + $0x8] sm:$0xff]
    %v253 = vld [vmem:[#allocation9 + $0x10] sm:$0xff]
    %v254 = vld [vmem:[#allocation9 + $0x18] sm:$0xff]
    %v255 = vld [vmem:[#allocation9 + $0x20] sm:$0xff]
    %v256 = vld [vmem:[#allocation9 + $0x28] sm:$0xff]
    %v257 = vld [vmem:[#allocation9 + $0x30] sm:$0xff]
    %v258 = vld [vmem:[#allocation9 + $0x38] sm:$0xff]
    %v259 = vld [vmem:[#allocation9 + $0x40] sm:$0xff]
    %v260 = vld [vmem:[#allocation9 + $0x48] sm:$0xff]
    %v261 = vld [vmem:[#allocation9 + $0x50] sm:$0xff]
    %v262 = vld [vmem:[#allocation9 + $0x58] sm:$0xff]
    %v263 = vld [vmem:[#allocation9 + $0x60] sm:$0xff]
    %v264 = vld [vmem:[#allocation9 + $0x68] sm:$0xff]
    %v265 = vld [vmem:[#allocation9 + $0x70] sm:$0xff]
    %v266 = vld [vmem:[#allocation9 + $0x78] sm:$0xff]
    %v267 = vld [vmem:[#allocation9 + $0x80] sm:$0xff]
    %v268 = vld [vmem:[#allocation9 + $0x88] sm:$0xff]
    %v269 = vld [vmem:[#allocation9 + $0x90] sm:$0xff]
    %v270 = vld [vmem:[#allocation9 + $0x98] sm:$0xff]
    %v271 = vld [vmem:[#allocation9 + $0xa0] sm:$0xff]
    %v272 = vld [vmem:[#allocation9 + $0xa8] sm:$0xff]
    %v273 = vld [vmem:[#allocation9 + $0xb0] sm:$0xff]
    %v274 = vld [vmem:[#allocation9 + $0xb8] sm:$0xff]
    %v275 = vld [vmem:[#allocation9 + $0xc0] sm:$0xff]
    %v276 = vld [vmem:[#allocation9 + $0xc8] sm:$0xff]
    %v277 = vld [vmem:[#allocation9 + $0xd0] sm:$0xff]
    %v278 = vld [vmem:[#allocation9 + $0xd8] sm:$0xff]
    %v279 = vld [vmem:[#allocation9 + $0xe0] sm:$0xff]
    %v280 = vld [vmem:[#allocation9 + $0xe8] sm:$0xff]
    %v281 = vld [vmem:[#allocation9 + $0xf0] sm:$0xff]
    %v282 = vld [vmem:[#allocation9 + $0xf8] sm:$0xff]
    %v283 = vld [vmem:[#allocation9 + $0x100] sm:$0xff]
    %v284 = vld [vmem:[#allocation9 + $0x108] sm:$0xff]
    %v285 = vld [vmem:[#allocation9 + $0x110] sm:$0xff]
    %v286 = vld [vmem:[#allocation9 + $0x118] sm:$0xff]
    %v287 = vld [vmem:[#allocation9 + $0x120] sm:$0xff]
    %v288 = vld [vmem:[#allocation9 + $0x128] sm:$0xff]
    %v289 = vld [vmem:[#allocation9 + $0x130] sm:$0xff]
    %v290 = vld [vmem:[#allocation9 + $0x138] sm:$0xff]
    %v291 = vld [vmem:[#allocation9 + $0x140] sm:$0xff]
    %v292 = vld [vmem:[#allocation9 + $0x148] sm:$0xff]
    %v293 = vld [vmem:[#allocation9 + $0x150] sm:$0xff]
    %v294 = vld [vmem:[#allocation9 + $0x158] sm:$0xff]
    %v295 = vld [vmem:[#allocation9 + $0x160] sm:$0xff]
    %v296 = vld [vmem:[#allocation9 + $0x168] sm:$0xff]
    %v297 = vld [vmem:[#allocation9 + $0x170] sm:$0xff]
    %v298 = vld [vmem:[#allocation9 + $0x178] sm:$0xff]
    %299 = vmatprep.subr.mxu0 %v252
    %300 = vmatpush1.msra.mxu0 %v251
    %301 = vmatprep.subr.mxu0 %v255
    %302 = vmatpush1.msra.mxu0 %v254
    %303 = vmatprep.subr.mxu0 %v258
    %304 = vmatpush1.msra.mxu0 %v257
    %305 = vmatprep.subr.mxu0 %v261
    %306 = vmatpush1.msra.mxu0 %v260
    %307 = vmatprep.subr.mxu0 %v264
    %308 = vmatpush1.msra.mxu0 %v263
    %309 = vmatprep.subr.mxu0 %v267
    %310 = vmatpush1.msra.mxu0 %v266
    %311 = vmatprep.subr.mxu0 %v270
    %312 = vmatpush1.msra.mxu0 %v269
    %313 = vmatprep.subr.mxu0 %v273
    %314 = vmatpush1.msra.mxu0 %v272
    %315 = vmatprep.subr.mxu0 %v276
    %316 = vmatpush1.msra.mxu0 %v275
    %317 = vmatprep.subr.mxu0 %v279
    %318 = vmatpush1.msra.mxu0 %v278
    %319 = vmatprep.subr.mxu0 %v282
    %320 = vmatpush1.msra.mxu0 %v281
    %321 = vmatprep.subr.mxu0 %v285
    %322 = vmatpush1.msra.mxu0 %v284
    %323 = vmatprep.subr.mxu0 %v288
    %324 = vmatpush1.msra.mxu0 %v287
    %325 = vmatprep.subr.mxu0 %v291
    %326 = vmatpush1.msra.mxu0 %v290
    %327 = vmatprep.subr.mxu0 %v294
    %328 = vmatpush1.msra.mxu0 %v293
    %329 = vmatprep.subr.mxu0 %v297
    %330 = vmatpush1.msra.mxu0 %v296
    %331 = vmatprep.subr.mxu0 0.0
    %332 = vmatpush1.msra.mxu0 0.0
    %333 = vmatprep.subr.mxu0 0.0
    %334 = vmatpush1.msra.mxu0 0.0
    %335 = vmatprep.subr.mxu0 0.0
    %336 = vmatpush1.msra.mxu0 0.0
    %337 = vmatprep.subr.mxu0 0.0
    %338 = vmatpush1.msra.mxu0 0.0
    %339 = vmatprep.subr.mxu0 0.0
    %340 = vmatpush1.msra.mxu0 0.0
    %341 = vmatprep.subr.mxu0 0.0
    %342 = vmatpush1.msra.mxu0 0.0
    %343 = vmatprep.subr.mxu0 0.0
    %344 = vmatpush1.msra.mxu0 0.0
    %345 = vmatprep.subr.mxu0 0.0
    %346 = vmatpush1.msra.mxu0 0.0
    %347 = vmatprep.subr.mxu0 0.0
    %348 = vmatpush1.msra.mxu0 0.0
    %349 = vmatprep.subr.mxu0 0.0
    %350 = vmatpush1.msra.mxu0 0.0
    %351 = vmatprep.subr.mxu0 0.0
    %352 = vmatpush1.msra.mxu0 0.0
    %353 = vmatprep.subr.mxu0 0.0
    %354 = vmatpush1.msra.mxu0 0.0
    %355 = vmatprep.subr.mxu0 0.0
    %356 = vmatpush1.msra.mxu0 0.0
    %357 = vmatprep.subr.mxu0 0.0
    %358 = vmatpush1.msra.mxu0 0.0
    %359 = vmatprep.subr.mxu0 0.0
    %360 = vmatpush1.msra.mxu0 0.0
    %361 = vmatprep.subr.mxu0 0.0
    %362 = vmatpush1.msra.mxu0 0.0
    %363 = vmatprep.mubr.f32.mxu0 0.0
    %364 = vmatmul.mubr.f32.gmra.mrb[0].mxu0 %v81
    %v365 = vpop.f32.mrb[0].mxu0
    %v366 = vadd.f32 0.0, %v365
    %v367 = vpop.f32.mrb[0].mxu0
    %v368 = vadd.f32 0.0, %v367
    %369 = vdwg.mxu0
    %370 = vmatprep.subr.mxu0 0.0
    %371 = vmatpush1.msra.mxu0 %v253
    %372 = vmatprep.subr.mxu0 0.0
    %373 = vmatpush1.msra.mxu0 %v256
    %374 = vmatprep.subr.mxu0 0.0
    %375 = vmatpush1.msra.mxu0 %v259
    %376 = vmatprep.subr.mxu0 0.0
    %377 = vmatpush1.msra.mxu0 %v262
    %378 = vmatprep.subr.mxu0 0.0
    %379 = vmatpush1.msra.mxu0 %v265
    %380 = vmatprep.subr.mxu0 0.0
    %381 = vmatpush1.msra.mxu0 %v268
    %382 = vmatprep.subr.mxu0 0.0
    %383 = vmatpush1.msra.mxu0 %v271
    %384 = vmatprep.subr.mxu0 0.0
    %385 = vmatpush1.msra.mxu0 %v274
    %386 = vmatprep.subr.mxu0 0.0
    %387 = vmatpush1.msra.mxu0 %v277
    %388 = vmatprep.subr.mxu0 0.0
    %389 = vmatpush1.msra.mxu0 %v280
    %390 = vmatprep.subr.mxu0 0.0
    %391 = vmatpush1.msra.mxu0 %v283
    %392 = vmatprep.subr.mxu0 0.0
    %393 = vmatpush1.msra.mxu0 %v286
    %394 = vmatprep.subr.mxu0 0.0
    %395 = vmatpush1.msra.mxu0 %v289
    %396 = vmatprep.subr.mxu0 0.0
    %397 = vmatpush1.msra.mxu0 %v292
    %398 = vmatprep.subr.mxu0 0.0
    %399 = vmatpush1.msra.mxu0 %v295
    %400 = vmatprep.subr.mxu0 0.0
    %401 = vmatpush1.msra.mxu0 %v298
    %402 = vmatprep.subr.mxu0 0.0
    %403 = vmatpush1.msra.mxu0 0.0
    %404 = vmatprep.subr.mxu0 0.0
    %405 = vmatpush1.msra.mxu0 0.0
    %406 = vmatprep.subr.mxu0 0.0
    %407 = vmatpush1.msra.mxu0 0.0
    %408 = vmatprep.subr.mxu0 0.0
    %409 = vmatpush1.msra.mxu0 0.0
    %410 = vmatprep.subr.mxu0 0.0
    %411 = vmatpush1.msra.mxu0 0.0
    %412 = vmatprep.subr.mxu0 0.0
    %413 = vmatpush1.msra.mxu0 0.0
    %414 = vmatprep.subr.mxu0 0.0
    %415 = vmatpush1.msra.mxu0 0.0
    %416 = vmatprep.subr.mxu0 0.0
    %417 = vmatpush1.msra.mxu0 0.0
    %418 = vmatprep.subr.mxu0 0.0
    %419 = vmatpush1.msra.mxu0 0.0
    %420 = vmatprep.subr.mxu0 0.0
    %421 = vmatpush1.msra.mxu0 0.0
    %422 = vmatprep.subr.mxu0 0.0
    %423 = vmatpush1.msra.mxu0 0.0
    %424 = vmatprep.subr.mxu0 0.0
    %425 = vmatpush1.msra.mxu0 0.0
    %426 = vmatprep.subr.mxu0 0.0
    %427 = vmatpush1.msra.mxu0 0.0
    %428 = vmatprep.subr.mxu0 0.0
    %429 = vmatpush1.msra.mxu0 0.0
    %430 = vmatprep.subr.mxu0 0.0
    %431 = vmatpush1.msra.mxu0 0.0
    %432 = vmatprep.subr.mxu0 0.0
    %433 = vmatpush1.msra.mxu0 0.0
    %434 = vmatprep.mubr.f32.mxu0 0.0
    %435 = vmatmul.mubr.f32.gmra.mrb[0].mxu0 %v81
    %v436 = vpop.f32.mrb[0].mxu0
    %v437 = vadd.f32 0.0, %v436
    %v438 = vpop.f32.mrb[0].mxu0
    %439 = vdwg.mxu0
    %v440 = vadd.f32 %v177, %v366
    %v441 = vadd.f32 %v179, %v368
    %v442 = vxor.u32 %v440, 2147483648
    %v443 = vmul.f32 %v442, 1.442695
    %v444 = vpow.pop %v443
    %v445 = vadd.f32 %v444, 1.0
    %v446 = vrcp.pop %v445
    %v447 = vmul.f32 1.0, %v446
    %v448 = vxor.u32 %v441, 2147483648
    %v449 = vmul.f32 %v448, 1.442695
    %v450 = vpow.pop %v449
    %v451 = vadd.f32 %v450, 1.0
    %v452 = vrcp.pop %v451
    %v453 = vmul.f32 1.0, %v452
    %v454 = vld [vmem:[%s5] sm:$0x1]
    %v456 = vlaneseq
    %v457 = vshrl.u32 %v456, 7
    %v458 = vsub.s32 0, %v457
    %v459 = vrot.slane %v454, %v458
    %v461 = vadd.f32 %v437, %v459
    %v462 = vmul.f32 %v447, %v461
    %v463 = vadd.f32 %v248, %v462
    %v464 = vtanh.pop %v463
    %v465 = vsub.f32 %v81, %v464
    %v466 = vmul.f32 %v453, %v465
    %v467 = vadd.f32 %v464, %v466
    %468 = vst [vmem:[#allocation2] sm:$0xff] %v467
    %469 = vst [vmem:[#allocation11] sm:$0xff] %v467
    // Predicated region
    $region46: #{tpu_custom_call.1} parent=1 // pred_check
      _
    $region47: #{tpu_custom_call.1} parent=1 // pred_check_branch
      %471 = sbr.rel (0) target = $region49
    $region48: #{tpu_custom_call.1} parent=1 // pred_region
      %s473 = ssub.s32 128, 128
      %474 = vsyncadd [#allocation5], %s473
      %s476 = sshll.u32 [#allocation11], 4
      %s477 = int_to_ptr.vmem [resolvable:$true] %s476
      %479 = dma.vmem_to_hbm [thread:$0]  %s477, 128, %s6, [#allocation5]
    $region49: #{tpu_custom_call.1} parent=1 // pred_fallthru
      _
    // Predicated region
    $region50: #{tpu_custom_call.1} parent=1 // pred_check
      _
    $region51: #{tpu_custom_call.1} parent=1 // pred_check_branch
      %481 = sbr.rel (0) target = $region53
    $region52: #{tpu_custom_call.1} parent=1 // pred_region
      %482 = dma.done [#allocation5], 128
    $region53: #{tpu_custom_call.1} parent=1 // pred_fallthru
      _
    %483 = vsyncpa [#allocation4], 1
    %484 = vsyncpa [#allocation7], 1
    %485 = vsyncpa [#allocation10], 1
    %486 = vsyncpa [#allocation5], 1

</llo_original>
